<compile_context>
chip_gen: v5e
topology: v5e:2x2
jax: 0.10.0
libtpu: 0.0.40
codegen_flags: <defaults>
</compile_context>

<pallas_src>
import jax
import jax.numpy as jnp
from jax.experimental import pallas as pl
from jax.experimental.pallas import tpu as pltpu

# ---- small, module-consistent config (scaled-down TextCNN) ----
BATCH = 2
SEQ = 16             # config.seq_length
EMB = 32             # scaled-down EMBEDDING_SIZE
VOCAB = 200          # scaled-down MAX_VOCAB_SIZE
OUT_CH = 16          # scaled-down output_channel
CLASS_NUM = 4        # config.class_num
KERNEL_SIZES = (3, 4, 5)

KMAX = max(KERNEL_SIZES)          # 5   shared im2col window height
PAD = KMAX - 2                    # 3   shared zero-pad rows each side
L_MAX = SEQ + KMAX - 3            # 18  longest conv output length (k=5)
L_PAD = 24                        # L_MAX rounded up to a multiple of 8 (sublane-aligned)
KE = KMAX * EMB                   # 160 fused contraction dim
C_PAD = 128                       # 3*OUT_CH = 48 padded to a full lane width
N_PAD = 128                       # CLASS_NUM = 4 padded to a full lane width
M_ROWS = BATCH * L_PAD            # 48  batch folded into the matmul M dimension


def textcnn_kernel(xcol_ref, wconv_ref, bconv_ref, mask_ref, fcw_ref, fcb_ref, out_ref):
    """Single invocation (no grid): fused conv matmul for ALL batch elements,
    bias + ReLU + masked global max-pool, then one batched FC matmul."""
    # One MXU pass with batch folded into M: [B*L_PAD, KE] @ [KE, C_PAD].
    conv = jnp.dot(xcol_ref[...], wconv_ref[...],
                   preferred_element_type=jnp.float32)          # [M_ROWS, C_PAD] f32
    conv = jnp.maximum(conv + bconv_ref[...], 0.0)              # conv bias + ReLU (VPU)
    # Zero rows that are invalid for a given branch (k=3/k=4 shorter outputs) or
    # that are pure L_PAD padding.  Safe ONLY because ReLU guarantees every valid
    # activation is >= 0, so a masked zero can never beat a valid maximum.
    conv = jnp.where(mask_ref[...] != 0, conv, 0.0)
    # Sublane-aligned unfold (48,128)->(2,24,128), then global max-pool per batch.
    feat = jnp.max(conv.reshape(BATCH, L_PAD, C_PAD), axis=1)   # [B, C_PAD]
    # Batched bf16 FC, f32 accumulation; padded rows/cols of fcw/fcb are zero.
    out_ref[...] = (jnp.dot(feat.astype(jnp.bfloat16), fcw_ref[...],
                            preferred_element_type=jnp.float32)
                    + fcb_ref[...])                             # [B, N_PAD] lane-dense store
    # TODO(synk): nn.Dropout is identity here (inference semantics); training-mode
    # RNG mask (pltpu.prng_seed + pltpu.stateful_bernoulli) is not implemented.


def textcnn_forward(tokens, emb_table, convs, fcw, fcb):
    """tokens: [B, SEQ] int32.  Gather / pad / im2col / weight fusion are XLA glue;
    the matmuls, ReLU, max-pool and FC run inside the single Pallas invocation."""
    B = tokens.shape[0]
    assert B == BATCH

    # --- XLA glue: embedding gather + shared zero-pad + one-shot im2col ---
    # TODO(synk): at realistic VOCAB/EMB/SEQ keep the table in HBM
    # (memory_space=pl.ANY), gather rows in-kernel via scalar-prefetched token ids
    # + pltpu.make_async_copy, and build the 5-row window slab in VMEM with pl.ds
    # slices instead of materializing im2col here (cuts activation HBM traffic ~5x).
    emb = emb_table[tokens].astype(jnp.float32)                    # [B, S, E]
    embp = jnp.pad(emb, ((0, 0), (PAD, PAD), (0, 0)))              # [B, S+2*PAD, E]
    xcol = jnp.concatenate(
        [embp[:, i:i + L_MAX, :] for i in range(KMAX)], axis=-1)   # [B, L_MAX, KMAX*E]
    xcol = jnp.pad(xcol, ((0, 0), (0, L_PAD - L_MAX), (0, 0)))     # pad rows 18 -> 24
    xcol2d = xcol.reshape(B * L_PAD, KE).astype(jnp.bfloat16)      # fold batch into M

    # --- fuse the 3 conv branches into one lane-dense [KE, C_PAD] weight slab ---
    wfused = jnp.zeros((KMAX, EMB, C_PAD), jnp.float32)
    bfused = jnp.zeros((1, C_PAD), jnp.float32)
    mask = jnp.zeros((L_PAD, C_PAD), jnp.float32)
    for idx, (k, (w, b)) in enumerate(zip(KERNEL_SIZES, convs)):
        off = KMAX - k                   # row offset of branch k inside the 5-row window
        c0 = idx * OUT_CH
        wfused = wfused.at[off:off + k, :, c0:c0 + OUT_CH].set(w)
        bfused = bfused.at[:, c0:c0 + OUT_CH].set(b)
        mask = mask.at[:SEQ + k - 3, c0:c0 + OUT_CH].set(1.0)      # valid output rows per branch
    wfused = wfused.reshape(KE, C_PAD).astype(jnp.bfloat16)
    mask_full = jnp.tile(mask, (B, 1))                             # [B*L_PAD, C_PAD]

    # --- pad FC to lane-dense [C_PAD, N_PAD] (bf16 weights, f32 bias/accum) ---
    fcw_p = (jnp.zeros((C_PAD, N_PAD), jnp.float32)
             .at[:fcw.shape[0], :CLASS_NUM].set(fcw)).astype(jnp.bfloat16)
    fcb_p = jnp.zeros((1, N_PAD), jnp.float32).at[:, :CLASS_NUM].set(fcb)

    vmem_spec = pl.BlockSpec(memory_space=pltpu.MemorySpace.VMEM)
    out = pl.pallas_call(
        textcnn_kernel,
        out_shape=jax.ShapeDtypeStruct((B, N_PAD), jnp.float32),
        in_specs=[vmem_spec] * 6,
        out_specs=vmem_spec,
    )(xcol2d, wfused, bfused, mask_full, fcw_p, fcb_p)

    return out[:, :CLASS_NUM]                                      # slice lane-dense logits


def ref_forward(tokens, emb_table, convs, fcw, fcb):
    """Pure-JAX f32 reference matching the PyTorch forward (eval mode)."""
    emb = emb_table[tokens].astype(jnp.float32)
    feats = []
    for k, (w, b) in zip(KERNEL_SIZES, convs):                     # w: [k, E, C]
        p = k - 2
        xpad = jnp.pad(emb, ((0, 0), (p, p), (0, 0)))
        length = SEQ + k - 3
        outs = []
        for t in range(length):
            win = xpad[:, t:t + k, :]                              # [B, k, E]
            outs.append(jnp.einsum('bke,kec->bc', win, w) + b[0])
        conv = jnp.maximum(jnp.stack(outs, axis=1), 0.0)           # [B, L, C]
        feats.append(conv.max(axis=1))
    feat = jnp.concatenate(feats, axis=1)
    return feat @ fcw + fcb[0]


def make_params(key):
    ks = jax.random.split(key, 2 + 2 * len(KERNEL_SIZES) + 2)
    emb_table = jax.random.normal(ks[0], (VOCAB, EMB), jnp.float32) * 0.1
    convs = []
    for i, k in enumerate(KERNEL_SIZES):
        w = jax.random.normal(ks[1 + 2 * i], (k, EMB, OUT_CH), jnp.float32) * 0.05
        b = jax.random.normal(ks[2 + 2 * i], (1, OUT_CH), jnp.float32) * 0.05
        convs.append((w, b))
    fcw = jax.random.normal(ks[-2], (len(KERNEL_SIZES) * OUT_CH, CLASS_NUM),
                            jnp.float32) * 0.05
    fcb = jax.random.normal(ks[-1], (1, CLASS_NUM), jnp.float32) * 0.05
    return emb_table, convs, fcw, fcb


if __name__ == "__main__":
    key = jax.random.PRNGKey(0)
    k_tok, k_par = jax.random.split(key)
    tokens = jax.random.randint(k_tok, (BATCH, SEQ), 0, VOCAB, dtype=jnp.int32)
    emb_table, convs, fcw, fcb = make_params(k_par)

    logits = textcnn_forward(tokens, emb_table, convs, fcw, fcb)
    logits = jax.block_until_ready(logits)

    expected = ref_forward(tokens, emb_table, convs, fcw, fcb)
    assert logits.shape == (BATCH, CLASS_NUM)
    # tolerance loosened vs the f32 reference because MXU inputs are bf16
    # (f32 accumulation); observed error is ~1e-3.
    assert jnp.allclose(logits, expected, atol=2e-2, rtol=2e-2), (logits, expected)
    print("KERNEL_OK")
</pallas_src>

<mosaic_0001>
module attributes {stable_mosaic.version = 11 : i64} {
  func.func @textcnn_kernel(%arg0: memref<48x160xbf16, #tpu.memory_space<vmem>>, %arg1: memref<160x128xbf16, #tpu.memory_space<vmem>>, %arg2: memref<1x128xf32, #tpu.memory_space<vmem>>, %arg3: memref<48x128xf32, #tpu.memory_space<vmem>>, %arg4: memref<128x128xbf16, #tpu.memory_space<vmem>>, %arg5: memref<1x128xf32, #tpu.memory_space<vmem>>, %arg6: memref<2x128xf32, #tpu.memory_space<vmem>>) attributes {dimension_semantics = [], scalar_prefetch = 0 : i64, scratch_operands = 0 : i64, tpu.core_type = #tpu.core_type<tc>} {
    %c0 = arith.constant 0 : index
    %c0_0 = arith.constant 0 : index
    %0 = vector.load %arg0[%c0, %c0_0] : memref<48x160xbf16, #tpu.memory_space<vmem>>, vector<48x160xbf16>
    %c0_1 = arith.constant 0 : index
    %c0_2 = arith.constant 0 : index
    %1 = vector.load %arg1[%c0_1, %c0_2] : memref<160x128xbf16, #tpu.memory_space<vmem>>, vector<160x128xbf16>
    %cst = arith.constant dense<0.000000e+00> : vector<48x128xf32>
    %2 = tpu.matmul %0, %1, %cst {dimension_numbers = #tpu.dot_dimension_numbers<[1], [0], [0], [1], [0, 0, 1, 1], [], []>} : vector<48x160xbf16>, vector<160x128xbf16>, vector<48x128xf32> -> vector<48x128xf32>
    %c0_3 = arith.constant 0 : index
    %c0_4 = arith.constant 0 : index
    %3 = vector.load %arg2[%c0_3, %c0_4] : memref<1x128xf32, #tpu.memory_space<vmem>>, vector<1x128xf32>
    %4 = vector.broadcast %3 : vector<1x128xf32> to vector<48x128xf32>
    %5 = arith.addf %2, %4 : vector<48x128xf32>
    %cst_5 = arith.constant 0.000000e+00 : f32
    %6 = vector.broadcast %cst_5 : f32 to vector<48x128xf32>
    %7 = arith.maximumf %5, %6 : vector<48x128xf32>
    %c0_6 = arith.constant 0 : index
    %c0_7 = arith.constant 0 : index
    %8 = vector.load %arg3[%c0_6, %c0_7] : memref<48x128xf32, #tpu.memory_space<vmem>>, vector<48x128xf32>
    %cst_8 = arith.constant 0.000000e+00 : f32
    %9 = vector.broadcast %cst_8 : f32 to vector<48x128xf32>
    %10 = arith.cmpf one, %8, %9 : vector<48x128xf32>
    %cst_9 = arith.constant 0.000000e+00 : f32
    %11 = vector.broadcast %cst_9 : f32 to vector<48x128xf32>
    %12 = arith.select %10, %7, %11 : vector<48x128xi1>, vector<48x128xf32>
    %13 = vector.shape_cast %12 : vector<48x128xf32> to vector<2x24x128xf32>
    %cst_10 = arith.constant dense<0xFF800000> : vector<2x128xf32>
    %14 = vector.multi_reduction <maximumf>, %13, %cst_10 [1] : vector<2x24x128xf32> to vector<2x128xf32>
    %15 = arith.truncf %14 : vector<2x128xf32> to vector<2x128xbf16>
    %c0_11 = arith.constant 0 : index
    %c0_12 = arith.constant 0 : index
    %16 = vector.load %arg4[%c0_11, %c0_12] : memref<128x128xbf16, #tpu.memory_space<vmem>>, vector<128x128xbf16>
    %cst_13 = arith.constant dense<0.000000e+00> : vector<2x128xf32>
    %17 = tpu.matmul %15, %16, %cst_13 {dimension_numbers = #tpu.dot_dimension_numbers<[1], [0], [0], [1], [0, 0, 1, 1], [], []>} : vector<2x128xbf16>, vector<128x128xbf16>, vector<2x128xf32> -> vector<2x128xf32>
    %c0_14 = arith.constant 0 : index
    %c0_15 = arith.constant 0 : index
    %18 = vector.load %arg5[%c0_14, %c0_15] : memref<1x128xf32, #tpu.memory_space<vmem>>, vector<1x128xf32>
    %19 = vector.broadcast %18 : vector<1x128xf32> to vector<2x128xf32>
    %20 = arith.addf %17, %19 : vector<2x128xf32>
    %c0_16 = arith.constant 0 : index
    %c0_17 = arith.constant 0 : index
    %21 = vector.load %arg6[%c0_16, %c0_17] : memref<2x128xf32, #tpu.memory_space<vmem>>, vector<2x128xf32>
    tpu.vector_store %arg6[%c0_16, %c0_17], %20 {strides = array<i32>} : memref<2x128xf32, #tpu.memory_space<vmem>>, vector<2x128xf32>,
    return
  }
}

</mosaic_0001>

<llo_original>
// kernel: tpu_custom_call.1
$region0: #{tpu_custom_call.1}
  #allocation0 [shape = 'u32[]', space=smem, size = 0x4, offset = 0x4, fixed_abs, tag = 'smem constant byte address 0x4 - core index']
  #allocation1 [shape = 'u32[72,128]{1,0:T(1,128)}', space=vmem, size = 0x9000, scoped, tag = 'internal scratch']
  %s0 = inlined_call_operand.hbm [shape: bf16[48,160], index: 0, kind: input, shape index: {}]
  %s1 = inlined_call_operand.hbm [shape: bf16[160,128], index: 1, kind: input, shape index: {}]
  %s2 = inlined_call_operand.vmem [shape: f32[1,128], index: 2, kind: input, shape index: {}]
  %s3 = inlined_call_operand.hbm [shape: f32[48,128], index: 3, kind: input, shape index: {}]
  %s4 = inlined_call_operand.hbm [shape: bf16[128,128], index: 4, kind: input, shape index: {}]
  %s5 = inlined_call_operand.vmem [shape: f32[1,128], index: 5, kind: input, shape index: {}]
  %s6 = inlined_call_operand.hbm [shape: f32[2,128], index: 6, kind: output, shape index: {}]
  %s7 = sld [smem:[#allocation0]]
  $region50: #{tpu_custom_call.1} parent=0
    _
  %s9 = ssub.s32 1, %s7
  %s10 = scalar_select 0, %s9, %s7
  $region1: #{tpu_custom_call.1} parent=0
    #allocation2 [shape = 'u8[24576]{0}', space=vmem, size = 0x6000, scoped, tag = 'input window, operand 0, single buffered']
    #allocation3 [shape = 's32[1]{0}', space=sflag, size = 0x4, scoped, tag = 'scoped memory for tpu_custom_call.1']
    #allocation4 [shape = 's32[1]{0}', space=sflag, size = 0x4, scoped, tag = 'scoped memory for tpu_custom_call.1']
    #allocation5 [shape = 'u8[40960]{0}', space=vmem, size = 0xa000, scoped, tag = 'input window, operand 1, single buffered']
    #allocation6 [shape = 's32[1]{0}', space=sflag, size = 0x4, scoped, tag = 'scoped memory for tpu_custom_call.1']
    #allocation7 [shape = 'u8[24576]{0}', space=vmem, size = 0x6000, scoped, tag = 'input window, operand 3, single buffered']
    #allocation8 [shape = 'u8[32768]{0}', space=vmem, size = 0x8000, scoped, tag = 'input window, operand 4, single buffered']
    #allocation9 [shape = 's32[1]{0}', space=sflag, size = 0x4, scoped, tag = 'scoped memory for tpu_custom_call.1']
    #allocation10 [shape = 'u8[1024]{0}', space=vmem, size = 0x400, scoped, tag = 'output window, operand 0, single buffered']
    %11 = vsyncpa [#allocation3], 0
    %12 = vsyncpa [#allocation6], 0
    %13 = vsyncpa [#allocation9], 0
    %14 = vsyncpa [#allocation4], 0
    // Predicated region
    $region2: #{tpu_custom_call.1} parent=1 // pred_check
      _
    $region3: #{tpu_custom_call.1} parent=1 // pred_check_branch
      %16 = sbr.rel (0) target = $region5
    $region4: #{tpu_custom_call.1} parent=1 // pred_region
      %18 = vsyncadd [#allocation3], 0
      %s19 = sshll.u32 %s0, 4
      %s20 = int_to_ptr.hbm [resolvable:$true] %s19
      %s21 = sshll.u32 [#allocation2], 4
      %s22 = int_to_ptr.vmem [resolvable:$true] %s21
      %27 = dma.hbm_to_vmem [thread:$0]  %s20, 768, %s22, [#allocation3], 128, 128, 8
    $region5: #{tpu_custom_call.1} parent=1 // pred_fallthru
      _
    // Predicated region
    $region6: #{tpu_custom_call.1} parent=1 // pred_check
      _
    $region7: #{tpu_custom_call.1} parent=1 // pred_check_branch
      %29 = sbr.rel (0) target = $region9
    $region8: #{tpu_custom_call.1} parent=1 // pred_region
      %31 = vsyncadd [#allocation6], 0
      %s32 = sshll.u32 %s1, 4
      %s33 = int_to_ptr.hbm [resolvable:$true] %s32
      %s34 = sshll.u32 [#allocation5], 4
      %s35 = int_to_ptr.vmem [resolvable:$true] %s34
      %40 = dma.hbm_to_vmem [thread:$0]  %s33, 1280, %s35, [#allocation6], 64, 64, 4
    $region9: #{tpu_custom_call.1} parent=1 // pred_fallthru
      _
    // Predicated region
    $region10: #{tpu_custom_call.1} parent=1 // pred_check
      _
    $region11: #{tpu_custom_call.1} parent=1 // pred_check_branch
      %42 = sbr.rel (0) target = $region13
    $region12: #{tpu_custom_call.1} parent=1 // pred_region
      _
    $region13: #{tpu_custom_call.1} parent=1 // pred_fallthru
      _
    // Predicated region
    $region14: #{tpu_custom_call.1} parent=1 // pred_check
      _
    $region15: #{tpu_custom_call.1} parent=1 // pred_check_branch
      %44 = sbr.rel (0) target = $region17
    $region16: #{tpu_custom_call.1} parent=1 // pred_region
      %46 = vsyncadd [#allocation6], 0
      %s47 = sshll.u32 %s3, 4
      %s48 = int_to_ptr.hbm [resolvable:$true] %s47
      %s49 = sshll.u32 [#allocation7], 4
      %s50 = int_to_ptr.vmem [resolvable:$true] %s49
      %55 = dma.hbm_to_vmem [thread:$0]  %s48, 768, %s50, [#allocation6], 128, 128, 8
    $region17: #{tpu_custom_call.1} parent=1 // pred_fallthru
      _
    // Predicated region
    $region18: #{tpu_custom_call.1} parent=1 // pred_check
      _
    $region19: #{tpu_custom_call.1} parent=1 // pred_check_branch
      %57 = sbr.rel (0) target = $region21
    $region20: #{tpu_custom_call.1} parent=1 // pred_region
      %59 = vsyncadd [#allocation9], 0
      %s60 = sshll.u32 %s4, 4
      %s61 = int_to_ptr.hbm [resolvable:$true] %s60
      %s62 = sshll.u32 [#allocation8], 4
      %s63 = int_to_ptr.vmem [resolvable:$true] %s62
      %68 = dma.hbm_to_vmem [thread:$0]  %s61, 1024, %s63, [#allocation9], 64, 64, 4
    $region21: #{tpu_custom_call.1} parent=1 // pred_fallthru
      _
    // Predicated region
    $region22: #{tpu_custom_call.1} parent=1 // pred_check
      _
    $region23: #{tpu_custom_call.1} parent=1 // pred_check_branch
      %70 = sbr.rel (0) target = $region25
    $region24: #{tpu_custom_call.1} parent=1 // pred_region
      _
    $region25: #{tpu_custom_call.1} parent=1 // pred_fallthru
      _
    // Predicated region
    $region26: #{tpu_custom_call.1} parent=1 // pred_check
      _
    $region27: #{tpu_custom_call.1} parent=1 // pred_check_branch
      %72 = sbr.rel (0) target = $region29
    $region28: #{tpu_custom_call.1} parent=1 // pred_region
      %74 = dma.done [#allocation3], 768
    $region29: #{tpu_custom_call.1} parent=1 // pred_fallthru
      _
    // Predicated region
    $region30: #{tpu_custom_call.1} parent=1 // pred_check
      _
    $region31: #{tpu_custom_call.1} parent=1 // pred_check_branch
      %76 = sbr.rel (0) target = $region33
    $region32: #{tpu_custom_call.1} parent=1 // pred_region
      %78 = dma.done [#allocation6], 1280
    $region33: #{tpu_custom_call.1} parent=1 // pred_fallthru
      _
    // Predicated region
    $region34: #{tpu_custom_call.1} parent=1 // pred_check
      _
    $region35: #{tpu_custom_call.1} parent=1 // pred_check_branch
      %80 = sbr.rel (0) target = $region37
    $region36: #{tpu_custom_call.1} parent=1 // pred_region
      %82 = dma.done [#allocation6], 768
    $region37: #{tpu_custom_call.1} parent=1 // pred_fallthru
      _
    // Predicated region
    $region38: #{tpu_custom_call.1} parent=1 // pred_check
      _
    $region39: #{tpu_custom_call.1} parent=1 // pred_check_branch
      %84 = sbr.rel (0) target = $region41
    $region40: #{tpu_custom_call.1} parent=1 // pred_region
      %86 = dma.done [#allocation9], 1024
    $region41: #{tpu_custom_call.1} parent=1 // pred_fallthru
      _
    %v88 = vld [vmem:[#allocation2] sm:$0xff]
    %v89 = vld [vmem:[#allocation2 + $0x8] sm:$0xff]
    %v90 = vld [vmem:[#allocation2 + $0x10] sm:$0xff]
    %v91 = vld [vmem:[#allocation2 + $0x18] sm:$0xff]
    %v92 = vld [vmem:[#allocation2 + $0x20] sm:$0xff]
    %v93 = vld [vmem:[#allocation2 + $0x28] sm:$0xff]
    %v94 = vld [vmem:[#allocation5] sm:$0xf]
    %v95 = vld [vmem:[#allocation5 + $0x4] sm:$0xf]
    %v96 = vld [vmem:[#allocation5 + $0x8] sm:$0xf]
    %v97 = vld [vmem:[#allocation5 + $0xc] sm:$0xf]
    %v98 = vld [vmem:[#allocation5 + $0x10] sm:$0xf]
    %v99 = vld [vmem:[#allocation5 + $0x14] sm:$0xf]
    %v100 = vld [vmem:[#allocation5 + $0x18] sm:$0xf]
    %v101 = vld [vmem:[#allocation5 + $0x1c] sm:$0xf]
    %v102 = vld [vmem:[#allocation5 + $0x20] sm:$0xf]
    %v103 = vld [vmem:[#allocation5 + $0x24] sm:$0xf]
    %v104 = vld [vmem:[#allocation5 + $0x28] sm:$0xf]
    %v105 = vld [vmem:[#allocation5 + $0x2c] sm:$0xf]
    %v106 = vld [vmem:[#allocation5 + $0x30] sm:$0xf]
    %v107 = vld [vmem:[#allocation5 + $0x34] sm:$0xf]
    %v108 = vld [vmem:[#allocation5 + $0x38] sm:$0xf]
    %v109 = vld [vmem:[#allocation5 + $0x3c] sm:$0xf]
    %v110 = vld [vmem:[#allocation5 + $0x40] sm:$0xf]
    %v111 = vld [vmem:[#allocation5 + $0x44] sm:$0xf]
    %v112 = vld [vmem:[#allocation5 + $0x48] sm:$0xf]
    %v113 = vld [vmem:[#allocation5 + $0x4c] sm:$0xf]
    %v114 = vld [vmem:[%s2] sm:$0x1]
    %v116 = vperm.slane %v114, 0
    %v124 = vunpack.c.l.b16 %v88
    %v125 = vunpack.c.h.b16 %v88
    %v126 = vunpack.c.l.b16 %v89
    %v127 = vunpack.c.h.b16 %v89
    %v128 = vunpack.c.l.b16 %v90
    %v129 = vunpack.c.h.b16 %v90
    %v130 = vunpack.c.l.b16 %v91
    %v131 = vunpack.c.h.b16 %v91
    %v132 = vunpack.c.l.b16 %v92
    %v133 = vunpack.c.h.b16 %v92
    %v134 = vunpack.c.l.b16 %v93
    %v135 = vunpack.c.h.b16 %v93
    %v136 = vpack.c.b16 %v126, %v124
    %v137 = vpack.c.b16 %v127, %v125
    %v138 = vpack.c.b16 %v130, %v128
    %v139 = vpack.c.b16 %v131, %v129
    %v140 = vpack.c.b16 %v134, %v132
    %v141 = vpack.c.b16 %v135, %v133
    %v165 = vunpack.c.l.b16 %v94
    %v166 = vunpack.c.l.b16 %v95
    %v167 = vunpack.c.l.b16 %v96
    %v168 = vunpack.c.l.b16 %v97
    %v169 = vunpack.c.l.b16 %v98
    %v170 = vunpack.c.l.b16 %v99
    %v171 = vunpack.c.l.b16 %v100
    %v172 = vunpack.c.l.b16 %v101
    %v173 = vunpack.c.l.b16 %v102
    %v174 = vunpack.c.l.b16 %v103
    %v175 = vunpack.c.l.b16 %v104
    %v176 = vunpack.c.l.b16 %v105
    %v177 = vunpack.c.l.b16 %v106
    %v178 = vunpack.c.l.b16 %v107
    %v179 = vunpack.c.l.b16 %v108
    %v180 = vunpack.c.l.b16 %v109
    %v181 = vunpack.c.l.b16 %v110
    %v182 = vunpack.c.l.b16 %v111
    %v183 = vunpack.c.l.b16 %v112
    %v184 = vunpack.c.l.b16 %v113
    %v185 = vpack.c.b16 %v166, %v165
    %v186 = vpack.c.b16 %v168, %v167
    %v187 = vpack.c.b16 %v170, %v169
    %v188 = vpack.c.b16 %v172, %v171
    %v189 = vpack.c.b16 %v174, %v173
    %v190 = vpack.c.b16 %v176, %v175
    %v191 = vpack.c.b16 %v178, %v177
    %v192 = vpack.c.b16 %v180, %v179
    %v193 = vpack.c.b16 %v182, %v181
    %v194 = vpack.c.b16 %v184, %v183
    %vm205 = vcmask 261120
    %v207 = vsel %vm205, %v137, 0
    %v210 = vsel %vm205, %v139, 0
    %v213 = vsel %vm205, %v141, 0
    %215 = vmatpush.bf16.msra.mxu0 %v192
    %216 = vmatpush.bf16.msra.mxu0 %v191
    %217 = vmatpush.bf16.msra.mxu0 %v190
    %218 = vmatpush.bf16.msra.mxu0 %v189
    %219 = vmatpush.bf16.msra.mxu0 %v188
    %220 = vmatpush.bf16.msra.mxu0 %v187
    %221 = vmatpush.bf16.msra.mxu0 %v186
    %222 = vmatpush.bf16.msra.mxu0 %v185
    %223 = vmatmul.bf16.gmra.mxu0 %v136
    %v224 = vpop.f32.mrf.mxu0
    %v225 = vadd.f32 %v116, %v224
    %v226 = vpop.f32.mrf.mxu0
    %v227 = vadd.f32 %v116, %v226
    %228 = vmatmul.bf16.gmra.mxu0 %v138
    %v229 = vpop.f32.mrf.mxu0
    %v230 = vadd.f32 %v116, %v229
    %v231 = vpop.f32.mrf.mxu0
    %v232 = vadd.f32 %v116, %v231
    %233 = vmatmul.bf16.gmra.mxu0 %v140
    %v234 = vpop.f32.mrf.mxu0
    %v235 = vadd.f32 %v116, %v234
    %v236 = vpop.f32.mrf.mxu0
    %v237 = vadd.f32 %v116, %v236
    %238 = vdwg.mxu0
    %239 = vmatpush.bf16.msra.mxu0 0
    %240 = vmatpush.bf16.msra.mxu0 0
    %241 = vmatpush.bf16.msra.mxu0 0
    %242 = vmatpush.bf16.msra.mxu0 0
    %243 = vmatpush.bf16.msra.mxu0 0
    %244 = vmatpush.bf16.msra.mxu0 0
    %245 = vmatpush.bf16.msra.mxu0 %v194
    %246 = vmatpush.bf16.msra.mxu0 %v193
    %247 = vmatmul.bf16.gmra.mxu0 %v207
    %v248 = vpop.f32.mrf.mxu0
    %v249 = vadd.f32 %v225, %v248
    %v250 = vpop.f32.mrf.mxu0
    %v251 = vadd.f32 %v227, %v250
    %252 = vmatmul.bf16.gmra.mxu0 %v210
    %v253 = vpop.f32.mrf.mxu0
    %v254 = vadd.f32 %v230, %v253
    %v255 = vpop.f32.mrf.mxu0
    %v256 = vadd.f32 %v232, %v255
    %257 = vmatmul.bf16.gmra.mxu0 %v213
    %v258 = vpop.f32.mrf.mxu0
    %v259 = vadd.f32 %v235, %v258
    %v260 = vpop.f32.mrf.mxu0
    %v261 = vadd.f32 %v237, %v260
    %262 = vdwg.mxu0
    %v263 = vmax.f32 %v249, 0.0
    %v264 = vmax.f32 %v251, 0.0
    %v265 = vmax.f32 %v254, 0.0
    %v266 = vmax.f32 %v256, 0.0
    %v267 = vmax.f32 %v259, 0.0
    %v268 = vmax.f32 %v261, 0.0
    %v269 = vld [vmem:[#allocation7] sm:$0xff]
    %v270 = vld [vmem:[#allocation7 + $0x8] sm:$0xff]
    %v271 = vld [vmem:[#allocation7 + $0x10] sm:$0xff]
    %v272 = vld [vmem:[#allocation7 + $0x18] sm:$0xff]
    %v273 = vld [vmem:[#allocation7 + $0x20] sm:$0xff]
    %v274 = vld [vmem:[#allocation7 + $0x28] sm:$0xff]
    %vm275 = vcmp.ne.f32.partialorder %v269, 0.0
    %vm276 = vcmp.ne.f32.partialorder %v270, 0.0
    %vm277 = vcmp.ne.f32.partialorder %v271, 0.0
    %vm278 = vcmp.ne.f32.partialorder %v272, 0.0
    %vm279 = vcmp.ne.f32.partialorder %v273, 0.0
    %vm280 = vcmp.ne.f32.partialorder %v274, 0.0
    %v281 = vsel %vm275, %v263, 0.0
    %v282 = vsel %vm276, %v264, 0.0
    %v283 = vsel %vm277, %v265, 0.0
    %v284 = vsel %vm278, %v266, 0.0
    %v285 = vsel %vm279, %v267, 0.0
    %v286 = vsel %vm280, %v268, 0.0
    %v287 = vmax.f32 %v281, %v283
    %v288 = vmax.f32 %v287, %v282
    %v289 = vrot.slane %v288, 4
    %v290 = vmax.f32 %v288, %v289
    %v291 = vrot.slane %v290, 2
    %v292 = vmax.f32 %v290, %v291
    %v293 = vrot.slane %v292, 1
    %v294 = vmax.f32 %v292, %v293
    %v295 = vmax.f32 %v284, %v286
    %v296 = vmax.f32 %v295, %v285
    %v297 = vrot.slane %v296, 4
    %v298 = vmax.f32 %v296, %v297
    %v299 = vrot.slane %v298, 2
    %v300 = vmax.f32 %v298, %v299
    %v301 = vrot.slane %v300, 1
    %v302 = vmax.f32 %v300, %v301
    %v303 = vpack.c.bf16 %v294, %v294
    %v304 = vpack.c.bf16 %v302, %v302
    %v305 = vld [vmem:[#allocation8] sm:$0xf]
    %v306 = vld [vmem:[#allocation8 + $0x4] sm:$0xf]
    %v307 = vld [vmem:[#allocation8 + $0x8] sm:$0xf]
    %v308 = vld [vmem:[#allocation8 + $0xc] sm:$0xf]
    %v309 = vld [vmem:[#allocation8 + $0x10] sm:$0xf]
    %v310 = vld [vmem:[#allocation8 + $0x14] sm:$0xf]
    %v311 = vld [vmem:[#allocation8 + $0x18] sm:$0xf]
    %v312 = vld [vmem:[#allocation8 + $0x1c] sm:$0xf]
    %v313 = vld [vmem:[#allocation8 + $0x20] sm:$0xf]
    %v314 = vld [vmem:[#allocation8 + $0x24] sm:$0xf]
    %v315 = vld [vmem:[#allocation8 + $0x28] sm:$0xf]
    %v316 = vld [vmem:[#allocation8 + $0x2c] sm:$0xf]
    %v317 = vld [vmem:[#allocation8 + $0x30] sm:$0xf]
    %v318 = vld [vmem:[#allocation8 + $0x34] sm:$0xf]
    %v319 = vld [vmem:[#allocation8 + $0x38] sm:$0xf]
    %v320 = vld [vmem:[#allocation8 + $0x3c] sm:$0xf]
    %v321 = vld [vmem:[%s5] sm:$0x1]
    %v323 = vperm.slane %v321, 0
    %v327 = vunpack.c.l.b16 %v303
    %v328 = vunpack.c.l.b16 %v304
    %vm329 = vcmask 1041409
    %v330 = vsel %vm329, %v328, %v327
    %v331 = vpack.c.b16 %v330, %v330
    %v349 = vunpack.c.l.b16 %v305
    %v350 = vunpack.c.l.b16 %v306
    %v351 = vunpack.c.l.b16 %v307
    %v352 = vunpack.c.l.b16 %v308
    %v353 = vunpack.c.l.b16 %v309
    %v354 = vunpack.c.l.b16 %v310
    %v355 = vunpack.c.l.b16 %v311
    %v356 = vunpack.c.l.b16 %v312
    %v357 = vunpack.c.l.b16 %v313
    %v358 = vunpack.c.l.b16 %v314
    %v359 = vunpack.c.l.b16 %v315
    %v360 = vunpack.c.l.b16 %v316
    %v361 = vunpack.c.l.b16 %v317
    %v362 = vunpack.c.l.b16 %v318
    %v363 = vunpack.c.l.b16 %v319
    %v364 = vunpack.c.l.b16 %v320
    %v365 = vpack.c.b16 %v350, %v349
    %v366 = vpack.c.b16 %v352, %v351
    %v367 = vpack.c.b16 %v354, %v353
    %v368 = vpack.c.b16 %v356, %v355
    %v369 = vpack.c.b16 %v358, %v357
    %v370 = vpack.c.b16 %v360, %v359
    %v371 = vpack.c.b16 %v362, %v361
    %v372 = vpack.c.b16 %v364, %v363
    %381 = vmatpush.bf16.msra.mxu0 %v372
    %382 = vmatpush.bf16.msra.mxu0 %v371
    %383 = vmatpush.bf16.msra.mxu0 %v370
    %384 = vmatpush.bf16.msra.mxu0 %v369
    %385 = vmatpush.bf16.msra.mxu0 %v368
    %386 = vmatpush.bf16.msra.mxu0 %v367
    %387 = vmatpush.bf16.msra.mxu0 %v366
    %388 = vmatpush.bf16.msra.mxu0 %v365
    %389 = vmatmul.bf16.gmra.mxu0 %v331
    %v390 = vpop.f32.mrf.mxu0
    %v391 = vadd.f32 %v323, %v390
    %v392 = vpop.f32.mrf.mxu0
    %393 = vdwg.mxu0
    %394 = vst [vmem:[#allocation10] sm:$0x3] %v391
    // Predicated region
    $region42: #{tpu_custom_call.1} parent=1 // pred_check
      _
    $region43: #{tpu_custom_call.1} parent=1 // pred_check_branch
      %396 = sbr.rel (0) target = $region45
    $region44: #{tpu_custom_call.1} parent=1 // pred_region
      %398 = vsyncadd [#allocation4], 0
      %s400 = sshll.u32 [#allocation10], 4
      %s401 = int_to_ptr.vmem [resolvable:$true] %s400
      %s402 = sshll.u32 %s6, 4
      %s403 = int_to_ptr.hbm [resolvable:$true] %s402
      %405 = dma.vmem_to_hbm [thread:$0]  %s401, 32, %s403, [#allocation4]
    $region45: #{tpu_custom_call.1} parent=1 // pred_fallthru
      _
    // Predicated region
    $region46: #{tpu_custom_call.1} parent=1 // pred_check
      _
    $region47: #{tpu_custom_call.1} parent=1 // pred_check_branch
      %407 = sbr.rel (0) target = $region49
    $region48: #{tpu_custom_call.1} parent=1 // pred_region
      %409 = dma.done [#allocation4], 32
    $region49: #{tpu_custom_call.1} parent=1 // pred_fallthru
      _
    %410 = vsyncpa [#allocation3], 1
    %411 = vsyncpa [#allocation6], 1
    %412 = vsyncpa [#allocation9], 1
    %413 = vsyncpa [#allocation4], 1

</llo_original>
